<compile_context>
chip_gen: v6e
topology: v6e:2x2x1
jax: 0.10.0
libtpu: 0.0.40
codegen_flags: <defaults>
</compile_context>

<pallas_src>
import jax
import jax.numpy as jnp
from jax import lax
from jax.experimental import pallas as pl
from jax.experimental.pallas import tpu as pltpu


def _cdiv(a, b):
    return -(-a // b)


def _round8(x):
    return _cdiv(x, 8) * 8


# ------------------------------ Pallas kernel --------------------------------
def _elastic_warp_kernel(img_ref, mask_ref, w_ref, img_out_ref, mask_out_ref):
    # img_ref:  (TR, HW)  row tile of flattened image planes (bf16)
    # mask_ref: (RM, HW)  full slab of flattened mask planes (bf16)
    # w_ref:    (HW, HW)  frozen bilinear sampling matrix, source-major (bf16)
    img_out_ref[...] = jnp.dot(
        img_ref[...], w_ref[...], preferred_element_type=jnp.float32
    ).astype(img_out_ref.dtype)

    # The mask slab is small (N * C_mask rows); warp it once at the first grid
    # step. Its output block has a constant index_map, so it stays resident in
    # VMEM and is written back once at the end of the grid.
    @pl.when(pl.program_id(0) == 0)
    def _():
        mask_out_ref[...] = jnp.dot(
            mask_ref[...], w_ref[...], preferred_element_type=jnp.float32
        ).astype(mask_out_ref.dtype)


@jax.jit
def _elastic_forward(img, mask, weight_t):
    """Warp img and mask with the frozen bilinear sampling matrix (bf16)."""
    N, C, H, W = img.shape
    Nm, Cm = mask.shape[0], mask.shape[1]
    HW = H * W
    Ri = N * C
    Rm = Nm * Cm

    img_rows = img.reshape(Ri, HW).astype(jnp.bfloat16)
    mask_rows = mask.reshape(Rm, HW).astype(jnp.bfloat16)

    # Row tile: full-extent for tiny inputs, else a large sublane-aligned tile.
    # Ragged last tile is handled by the cdiv grid -- no host-side padding.
    tr = Ri if Ri <= 8 else min(1024, _round8(Ri))
    grid = (_cdiv(Ri, tr),)

    # Single-buffer the (constant-index) weight block once it is big enough to
    # matter for VMEM; keep default double-buffering for small weights.
    w_bytes = HW * HW * 2  # bf16
    w_kwargs = {}
    if w_bytes >= (8 << 20):
        w_kwargs["pipeline_mode"] = pl.Buffered(1)
    w_spec = pl.BlockSpec((HW, HW), lambda r: (0, 0), **w_kwargs)

    out_i_bytes = jnp.dtype(img.dtype).itemsize
    out_m_bytes = jnp.dtype(mask.dtype).itemsize
    vmem_need = (
        2 * w_bytes
        + 2 * tr * HW * (2 + out_i_bytes)
        + 2 * Rm * HW * (2 + out_m_bytes)
        + (1 << 20)
    )
    # 'arbitrary' (not 'parallel'): the mask output block has a constant
    # index_map, so megacore partitioning of the row axis would have every
    # core write it back; parallel/arbitrary is perf-neutral on v5e/v6e.
    # TODO(synk): for v7x 2-TC use, split the mask into its own pallas_call
    # and mark the img row axis 'parallel'.
    cp = {"dimension_semantics": ("arbitrary",)}
    if vmem_need > (16 << 20):  # beyond v5e's default scoped-VMEM limit
        cp["vmem_limit_bytes"] = int(min(vmem_need, 100 << 20))

    img_out, mask_out = pl.pallas_call(
        _elastic_warp_kernel,
        out_shape=(
            jax.ShapeDtypeStruct((Ri, HW), img.dtype),
            jax.ShapeDtypeStruct((Rm, HW), mask.dtype),
        ),
        grid=grid,
        in_specs=[
            pl.BlockSpec((tr, HW), lambda r: (r, 0)),
            pl.BlockSpec((Rm, HW), lambda r: (0, 0)),
            w_spec,
        ],
        out_specs=(
            pl.BlockSpec((tr, HW), lambda r: (r, 0)),
            pl.BlockSpec((Rm, HW), lambda r: (0, 0)),
        ),
        compiler_params=pltpu.CompilerParams(**cp),
    )(img_rows, mask_rows, weight_t)

    return img_out.reshape(N, C, H, W), mask_out.reshape(Nm, Cm, H, W)


# --------------------- step()-time helpers (plain JAX) ------------------------
def _gaussian_kernel1d(ksize, sigma):
    x = jnp.arange(ksize, dtype=jnp.float32) - (ksize - 1) / 2.0
    pdf = jnp.exp(-0.5 * (x / sigma) ** 2)
    return pdf / pdf.sum()


def _gaussian_blur(x, ksize, sigma):
    # x: (1, 1, H, W); mirrors torchvision gaussian_blur (reflect padding,
    # separable 1D gaussian).
    k1d = _gaussian_kernel1d(ksize, sigma)
    pad = ksize // 2
    xp = jnp.pad(x, ((0, 0), (0, 0), (pad, pad), (pad, pad)), mode="reflect")
    kx = k1d.reshape(1, 1, 1, ksize)
    ky = k1d.reshape(1, 1, ksize, 1)
    dn = ("NCHW", "OIHW", "NCHW")
    xp = lax.conv_general_dilated(xp, kx, (1, 1), "VALID", dimension_numbers=dn)
    xp = lax.conv_general_dilated(xp, ky, (1, 1), "VALID", dimension_numbers=dn)
    return xp


def _source_coords(displacement, size):
    """Per-output-pixel source coords (iy, ix): identity grid + displacement,
    un-normalized with grid_sample align_corners=False convention."""
    H, W = size
    ys = (2.0 * jnp.arange(H, dtype=jnp.float32) - H + 1.0) / H
    xs = (2.0 * jnp.arange(W, dtype=jnp.float32) - W + 1.0) / W
    gy, gx = jnp.meshgrid(ys, xs, indexing="ij")          # (H, W)
    gx = gx + displacement[0, ..., 0]
    gy = gy + displacement[0, ..., 1]
    ix = ((gx + 1.0) * W - 1.0) * 0.5
    iy = ((gy + 1.0) * H - 1.0) * 0.5
    return iy, ix


def _build_bilinear_weight_t(displacement, size):
    """Dense (H*W, H*W) matrix W_t with W_t[src, dst] = bilinear weight so that
    out_flat = x_flat @ W_t == grid_sample(bilinear, zeros padding)."""
    H, W = size
    HW = H * W
    iy, ix = _source_coords(displacement, size)
    x0f = jnp.floor(ix)
    y0f = jnp.floor(iy)
    wx1 = ix - x0f
    wx0 = 1.0 - wx1
    wy1 = iy - y0f
    wy0 = 1.0 - wy1
    x0 = x0f.astype(jnp.int32)
    y0 = y0f.astype(jnp.int32)
    out_idx = jnp.arange(HW, dtype=jnp.int32)

    S = jnp.zeros((HW, HW), jnp.float32)  # S[dst, src]

    def scatter(S, yi, xi, w):
        valid = (xi >= 0) & (xi < W) & (yi >= 0) & (yi < H)
        src = jnp.clip(yi, 0, H - 1) * W + jnp.clip(xi, 0, W - 1)
        w = jnp.where(valid, w, 0.0)
        return S.at[out_idx, src.reshape(-1)].add(w.reshape(-1))

    S = scatter(S, y0, x0, wy0 * wx0)
    S = scatter(S, y0, x0 + 1, wy0 * wx1)
    S = scatter(S, y0 + 1, x0, wy1 * wx0)
    S = scatter(S, y0 + 1, x0 + 1, wy1 * wx1)
    return S.T  # (src, dst)


def _elastic_ref(x, displacement):
    """Plain-JAX reference: bilinear grid_sample with zeros padding."""
    N, C, H, W = x.shape
    iy, ix = _source_coords(displacement, (H, W))
    x0 = jnp.floor(ix).astype(jnp.int32)
    y0 = jnp.floor(iy).astype(jnp.int32)
    wx1 = ix - x0
    wx0 = 1.0 - wx1
    wy1 = iy - y0
    wy0 = 1.0 - wy1

    def gather(yi, xi):
        valid = (xi >= 0) & (xi < W) & (yi >= 0) & (yi < H)
        yc = jnp.clip(yi, 0, H - 1)
        xc = jnp.clip(xi, 0, W - 1)
        v = x[:, :, yc, xc]                       # (N, C, H, W)
        return v * jnp.where(valid, 1.0, 0.0)

    return (
        gather(y0, x0) * (wy0 * wx0)
        + gather(y0, x0 + 1) * (wy0 * wx1)
        + gather(y0 + 1, x0) * (wy1 * wx0)
        + gather(y0 + 1, x0 + 1) * (wy1 * wx1)
    )


# --------------------------------- Module ------------------------------------
class Elastic:
    """JAX/Pallas port of the PyTorch `Elastic` repeatable transform.

    The random displacement field is sampled in step() and frozen until the
    next step(); forward() applies the same elastic warp (bilinear, zeros
    padding, align_corners=False -- torchvision elastic_transform defaults)
    to both img and mask via one jitted Pallas MXU kernel.
    """

    def __init__(self, alpha, sigma, im_shape=(256, 256), key=None):
        self.alpha = float(alpha)
        self.sigma = float(sigma)
        self.im_shape = tuple(im_shape)
        self._key = key if key is not None else jax.random.PRNGKey(0)
        self.displacement = None
        self.weight_t = None
        self.step()

    def step(self):
        H, W = self.im_shape
        self._key, k_dx, k_dy = jax.random.split(self._key, 3)
        dx = jax.random.uniform(k_dx, (1, 1, H, W), dtype=jnp.float32) * 2.0 - 1.0
        dy = jax.random.uniform(k_dy, (1, 1, H, W), dtype=jnp.float32) * 2.0 - 1.0
        if self.sigma > 0.0:
            k = int(8 * self.sigma + 1)
            if k % 2 == 0:
                k += 1
            dx = _gaussian_blur(dx, k, self.sigma)
            dy = _gaussian_blur(dy, k, self.sigma)
        dx = dx * self.alpha / H      # size[0], as in the PyTorch module
        dy = dy * self.alpha / W      # size[1]
        # (1, H, W, 2): channel 0 = x-displacement, channel 1 = y-displacement
        self.displacement = jnp.concatenate([dx, dy], axis=1).transpose(0, 2, 3, 1)
        # Frozen bf16 bilinear sampling matrix consumed by the Pallas kernel.
        # TODO(synk): infeasible at the default im_shape=(256,256) (16 GiB in
        # f32); a scalable version needs the in-kernel gather formulation.
        self.weight_t = _build_bilinear_weight_t(
            self.displacement, self.im_shape
        ).astype(jnp.bfloat16)

    def __call__(self, img, mask):
        N, C, H, W = img.shape
        Nm, Cm, Hm, Wm = mask.shape
        assert (H, W) == self.im_shape and (Hm, Wm) == self.im_shape
        return _elastic_forward(img, mask, self.weight_t)


if __name__ == "__main__":
    key = jax.random.PRNGKey(0)
    k_img, k_mask, k_mod = jax.random.split(key, 3)

    N, C, H, W = 2, 4, 16, 16
    img = jax.random.normal(k_img, (N, C, H, W), dtype=jnp.float32)
    mask = (jax.random.uniform(k_mask, (N, 1, H, W)) > 0.5).astype(jnp.float32)

    transform = Elastic(alpha=10.0, sigma=2.0, im_shape=(H, W), key=k_mod)

    out_img, out_mask = transform(img, mask)
    out_img = jax.block_until_ready(out_img)
    out_mask = jax.block_until_ready(out_mask)

    # correctness check against plain-JAX reference (gather-based grid_sample);
    # bf16 MXU inputs -> loosened tolerance.
    ref_img = _elastic_ref(img, transform.displacement)
    ref_mask = _elastic_ref(mask, transform.displacement)
    assert out_img.shape == img.shape and out_mask.shape == mask.shape
    assert jnp.allclose(out_img, ref_img, atol=5e-2), "img mismatch vs reference"
    assert jnp.allclose(out_mask, ref_mask, atol=5e-2), "mask mismatch vs reference"

    print("KERNEL_OK")
</pallas_src>

<mosaic_0001>
module attributes {stable_mosaic.version = 11 : i64} {
  func.func @_elastic_warp_kernel(%arg0: i32, %arg1: memref<8x256xbf16, #tpu.memory_space<vmem>>, %arg2: memref<2x256xbf16, #tpu.memory_space<vmem>>, %arg3: memref<256x256xbf16, #tpu.memory_space<vmem>>, %arg4: memref<8x256xf32, #tpu.memory_space<vmem>>, %arg5: memref<2x256xf32, #tpu.memory_space<vmem>>) attributes {dimension_semantics = [#tpu.dimension_semantics<arbitrary>], iteration_bounds = array<i64: 1>, scalar_prefetch = 0 : i64, scratch_operands = 0 : i64, tpu.core_type = #tpu.core_type<tc>, window_params = [{transform_indices = @transform_0, window_bounds = array<i64: 8, 256>}, {pipeline_mode = #tpu.pipeline_mode<synchronous>, transform_indices = @transform_1, window_bounds = array<i64: 2, 256>}, {pipeline_mode = #tpu.pipeline_mode<synchronous>, transform_indices = @transform_2, window_bounds = array<i64: 256, 256>}, {transform_indices = @transform_3, window_bounds = array<i64: 8, 256>}, {pipeline_mode = #tpu.pipeline_mode<synchronous>, transform_indices = @transform_4, window_bounds = array<i64: 2, 256>}]} {
    %c0 = arith.constant 0 : index
    %c0_0 = arith.constant 0 : index
    %0 = vector.load %arg1[%c0, %c0_0] : memref<8x256xbf16, #tpu.memory_space<vmem>>, vector<8x256xbf16>
    %c0_1 = arith.constant 0 : index
    %c0_2 = arith.constant 0 : index
    %1 = vector.load %arg3[%c0_1, %c0_2] : memref<256x256xbf16, #tpu.memory_space<vmem>>, vector<256x256xbf16>
    %cst = arith.constant dense<0.000000e+00> : vector<8x256xf32>
    %2 = tpu.matmul %0, %1, %cst {dimension_numbers = #tpu.dot_dimension_numbers<[1], [0], [0], [1], [0, 0, 1, 1], [], []>} : vector<8x256xbf16>, vector<256x256xbf16>, vector<8x256xf32> -> vector<8x256xf32>
    %c0_3 = arith.constant 0 : index
    %c0_4 = arith.constant 0 : index
    %3 = vector.load %arg4[%c0_3, %c0_4] : memref<8x256xf32, #tpu.memory_space<vmem>>, vector<8x256xf32>
    tpu.vector_store %arg4[%c0_3, %c0_4], %2 {strides = array<i32>} : memref<8x256xf32, #tpu.memory_space<vmem>>, vector<8x256xf32>,
    %c0_i32 = arith.constant 0 : i32
    %4 = arith.cmpi eq, %arg0, %c0_i32 : i32
    %5 = arith.extui %4 : i1 to i32
    %c0_i32_5 = arith.constant 0 : i32
    %6 = arith.cmpi ne, %5, %c0_i32_5 : i32
    scf.if %6 {
      %c0_6 = arith.constant 0 : index
      %c0_7 = arith.constant 0 : index
      %7 = vector.load %arg2[%c0_6, %c0_7] : memref<2x256xbf16, #tpu.memory_space<vmem>>, vector<2x256xbf16>
      %c0_8 = arith.constant 0 : index
      %c0_9 = arith.constant 0 : index
      %8 = vector.load %arg3[%c0_8, %c0_9] : memref<256x256xbf16, #tpu.memory_space<vmem>>, vector<256x256xbf16>
      %cst_10 = arith.constant dense<0.000000e+00> : vector<2x256xf32>
      %9 = tpu.matmul %7, %8, %cst_10 {dimension_numbers = #tpu.dot_dimension_numbers<[1], [0], [0], [1], [0, 0, 1, 1], [], []>} : vector<2x256xbf16>, vector<256x256xbf16>, vector<2x256xf32> -> vector<2x256xf32>
      %c0_11 = arith.constant 0 : index
      %c0_12 = arith.constant 0 : index
      %10 = vector.load %arg5[%c0_11, %c0_12] : memref<2x256xf32, #tpu.memory_space<vmem>>, vector<2x256xf32>
      tpu.vector_store %arg5[%c0_11, %c0_12], %9 {strides = array<i32>} : memref<2x256xf32, #tpu.memory_space<vmem>>, vector<2x256xf32>,
    } else {
    }
    return
  }
  func.func @transform_0(%arg0: i32) -> (i32, i32) {
    %c0_i32 = arith.constant 0 : i32
    %c0_i32_0 = arith.constant 0 : i32
    return %arg0, %c0_i32 : i32, i32
  }
  func.func @transform_1(%arg0: i32) -> (i32, i32) {
    %c0_i32 = arith.constant 0 : i32
    %c0_i32_0 = arith.constant 0 : i32
    %c0_i32_1 = arith.constant 0 : i32
    return %c0_i32, %c0_i32_0 : i32, i32
  }
  func.func @transform_2(%arg0: i32) -> (i32, i32) {
    %c0_i32 = arith.constant 0 : i32
    %c0_i32_0 = arith.constant 0 : i32
    %c0_i32_1 = arith.constant 0 : i32
    return %c0_i32, %c0_i32_0 : i32, i32
  }
  func.func @transform_3(%arg0: i32) -> (i32, i32) {
    %c0_i32 = arith.constant 0 : i32
    %c0_i32_0 = arith.constant 0 : i32
    return %arg0, %c0_i32 : i32, i32
  }
  func.func @transform_4(%arg0: i32) -> (i32, i32) {
    %c0_i32 = arith.constant 0 : i32
    %c0_i32_0 = arith.constant 0 : i32
    %c0_i32_1 = arith.constant 0 : i32
    return %c0_i32, %c0_i32_0 : i32, i32
  }
}

</mosaic_0001>

<llo_original>
// kernel: _elastic_forward.1
$region0: #{_elastic_forward.1}
  #allocation0 [shape = 'u32[]', space=smem, size = 0x4, offset = 0x4, fixed_abs, tag = 'smem constant byte address 0x4 - core index']
  #allocation1 [shape = 'u32[144,128]{1,0:T(1,128)}', space=vmem, size = 0x12000, scoped, tag = 'internal scratch']
  %s0 = inlined_call_operand.vmem [shape: bf16[8,256], index: 0, kind: input, shape index: {}]
  %s1 = inlined_call_operand.vmem [shape: bf16[2,256], index: 1, kind: input, shape index: {}]
  %s2 = inlined_call_operand.vmem [shape: bf16[256,256], index: 2, kind: input, shape index: {}]
  %s3 = inlined_call_operand.vmem [shape: f32[8,256], index: 3, kind: output, shape index: {0}]
  %s4 = inlined_call_operand.vmem [shape: f32[2,256], index: 4, kind: output, shape index: {1}]
  %5 = xla_tuple %s3, %s4
  %s6 = sld [smem:[#allocation0]]
  $region34: #{_elastic_forward.1} parent=0
    _
  %s8 = ssub.s32 1, %s6
  %s9 = scalar_select 0, %s8, %s6
  // Predicated region
  $region2: #{_elastic_forward.1} parent=0 // pred_check
    _
  $region3: #{_elastic_forward.1} parent=0 // pred_check_branch
    %11 = sbr.rel (0) target = $region5
  $region4: #{_elastic_forward.1} parent=0 // pred_region
    _
  $region5: #{_elastic_forward.1} parent=0 // pred_fallthru
    _
  // Predicated region
  $region6: #{_elastic_forward.1} parent=0 // pred_check
    _
  $region7: #{_elastic_forward.1} parent=0 // pred_check_branch
    %13 = sbr.rel (0) target = $region9
  $region8: #{_elastic_forward.1} parent=0 // pred_region
    _
  $region9: #{_elastic_forward.1} parent=0 // pred_fallthru
    _
  // Predicated region
  $region10: #{_elastic_forward.1} parent=0 // pred_check
    _
  $region11: #{_elastic_forward.1} parent=0 // pred_check_branch
    %15 = sbr.rel (0) target = $region13
  $region12: #{_elastic_forward.1} parent=0 // pred_region
    _
  $region13: #{_elastic_forward.1} parent=0 // pred_fallthru
    _
  %v16 = vld [vmem:[%s0] sm:$0xff]
  %v17 = vld [vmem:[%s2] sm:$0xff]
  %v18 = vld [vmem:[%s2 + $0x8] sm:$0xff]
  %v19 = vld [vmem:[%s2 + $0x10] sm:$0xff]
  %v20 = vld [vmem:[%s2 + $0x18] sm:$0xff]
  %v21 = vld [vmem:[%s2 + $0x20] sm:$0xff]
  %v22 = vld [vmem:[%s2 + $0x28] sm:$0xff]
  %v23 = vld [vmem:[%s2 + $0x30] sm:$0xff]
  %v24 = vld [vmem:[%s2 + $0x38] sm:$0xff]
  %v25 = vld [vmem:[%s2 + $0x40] sm:$0xff]
  %v26 = vld [vmem:[%s2 + $0x48] sm:$0xff]
  %v27 = vld [vmem:[%s2 + $0x50] sm:$0xff]
  %v28 = vld [vmem:[%s2 + $0x58] sm:$0xff]
  %v29 = vld [vmem:[%s2 + $0x60] sm:$0xff]
  %v30 = vld [vmem:[%s2 + $0x68] sm:$0xff]
  %v31 = vld [vmem:[%s2 + $0x70] sm:$0xff]
  %v32 = vld [vmem:[%s2 + $0x78] sm:$0xff]
  %v33 = vld [vmem:[%s2 + $0x80] sm:$0xff]
  %v34 = vld [vmem:[%s2 + $0x88] sm:$0xff]
  %v35 = vld [vmem:[%s2 + $0x90] sm:$0xff]
  %v36 = vld [vmem:[%s2 + $0x98] sm:$0xff]
  %v37 = vld [vmem:[%s2 + $0xa0] sm:$0xff]
  %v38 = vld [vmem:[%s2 + $0xa8] sm:$0xff]
  %v39 = vld [vmem:[%s2 + $0xb0] sm:$0xff]
  %v40 = vld [vmem:[%s2 + $0xb8] sm:$0xff]
  %v41 = vld [vmem:[%s2 + $0xc0] sm:$0xff]
  %v42 = vld [vmem:[%s2 + $0xc8] sm:$0xff]
  %v43 = vld [vmem:[%s2 + $0xd0] sm:$0xff]
  %v44 = vld [vmem:[%s2 + $0xd8] sm:$0xff]
  %v45 = vld [vmem:[%s2 + $0xe0] sm:$0xff]
  %v46 = vld [vmem:[%s2 + $0xe8] sm:$0xff]
  %v47 = vld [vmem:[%s2 + $0xf0] sm:$0xff]
  %v48 = vld [vmem:[%s2 + $0xf8] sm:$0xff]
  %v50 = vunpack.c.l.b16 %v16
  %v51 = vunpack.c.h.b16 %v16
  %v52 = vpack.c.b16 %v50, %v50
  %v53 = vpack.c.b16 %v51, %v51
  %v88 = vunpack.c.l.b16 %v17
  %v89 = vunpack.c.h.b16 %v17
  %v90 = vunpack.c.l.b16 %v18
  %v91 = vunpack.c.h.b16 %v18
  %v92 = vunpack.c.l.b16 %v19
  %v93 = vunpack.c.h.b16 %v19
  %v94 = vunpack.c.l.b16 %v20
  %v95 = vunpack.c.h.b16 %v20
  %v96 = vunpack.c.l.b16 %v21
  %v97 = vunpack.c.h.b16 %v21
  %v98 = vunpack.c.l.b16 %v22
  %v99 = vunpack.c.h.b16 %v22
  %v100 = vunpack.c.l.b16 %v23
  %v101 = vunpack.c.h.b16 %v23
  %v102 = vunpack.c.l.b16 %v24
  %v103 = vunpack.c.h.b16 %v24
  %v104 = vunpack.c.l.b16 %v25
  %v105 = vunpack.c.h.b16 %v25
  %v106 = vunpack.c.l.b16 %v26
  %v107 = vunpack.c.h.b16 %v26
  %v108 = vunpack.c.l.b16 %v27
  %v109 = vunpack.c.h.b16 %v27
  %v110 = vunpack.c.l.b16 %v28
  %v111 = vunpack.c.h.b16 %v28
  %v112 = vunpack.c.l.b16 %v29
  %v113 = vunpack.c.h.b16 %v29
  %v114 = vunpack.c.l.b16 %v30
  %v115 = vunpack.c.h.b16 %v30
  %v116 = vunpack.c.l.b16 %v31
  %v117 = vunpack.c.h.b16 %v31
  %v118 = vunpack.c.l.b16 %v32
  %v119 = vunpack.c.h.b16 %v32
  %v120 = vunpack.c.l.b16 %v33
  %v121 = vunpack.c.h.b16 %v33
  %v122 = vunpack.c.l.b16 %v34
  %v123 = vunpack.c.h.b16 %v34
  %v124 = vunpack.c.l.b16 %v35
  %v125 = vunpack.c.h.b16 %v35
  %v126 = vunpack.c.l.b16 %v36
  %v127 = vunpack.c.h.b16 %v36
  %v128 = vunpack.c.l.b16 %v37
  %v129 = vunpack.c.h.b16 %v37
  %v130 = vunpack.c.l.b16 %v38
  %v131 = vunpack.c.h.b16 %v38
  %v132 = vunpack.c.l.b16 %v39
  %v133 = vunpack.c.h.b16 %v39
  %v134 = vunpack.c.l.b16 %v40
  %v135 = vunpack.c.h.b16 %v40
  %v136 = vunpack.c.l.b16 %v41
  %v137 = vunpack.c.h.b16 %v41
  %v138 = vunpack.c.l.b16 %v42
  %v139 = vunpack.c.h.b16 %v42
  %v140 = vunpack.c.l.b16 %v43
  %v141 = vunpack.c.h.b16 %v43
  %v142 = vunpack.c.l.b16 %v44
  %v143 = vunpack.c.h.b16 %v44
  %v144 = vunpack.c.l.b16 %v45
  %v145 = vunpack.c.h.b16 %v45
  %v146 = vunpack.c.l.b16 %v46
  %v147 = vunpack.c.h.b16 %v46
  %v148 = vunpack.c.l.b16 %v47
  %v149 = vunpack.c.h.b16 %v47
  %v150 = vunpack.c.l.b16 %v48
  %v151 = vunpack.c.h.b16 %v48
  %v152 = vpack.c.b16 %v90, %v88
  %v153 = vpack.c.b16 %v91, %v89
  %v154 = vpack.c.b16 %v94, %v92
  %v155 = vpack.c.b16 %v95, %v93
  %v156 = vpack.c.b16 %v98, %v96
  %v157 = vpack.c.b16 %v99, %v97
  %v158 = vpack.c.b16 %v102, %v100
  %v159 = vpack.c.b16 %v103, %v101
  %v160 = vpack.c.b16 %v106, %v104
  %v161 = vpack.c.b16 %v107, %v105
  %v162 = vpack.c.b16 %v110, %v108
  %v163 = vpack.c.b16 %v111, %v109
  %v164 = vpack.c.b16 %v114, %v112
  %v165 = vpack.c.b16 %v115, %v113
  %v166 = vpack.c.b16 %v118, %v116
  %v167 = vpack.c.b16 %v119, %v117
  %v168 = vpack.c.b16 %v122, %v120
  %v169 = vpack.c.b16 %v123, %v121
  %v170 = vpack.c.b16 %v126, %v124
  %v171 = vpack.c.b16 %v127, %v125
  %v172 = vpack.c.b16 %v130, %v128
  %v173 = vpack.c.b16 %v131, %v129
  %v174 = vpack.c.b16 %v134, %v132
  %v175 = vpack.c.b16 %v135, %v133
  %v176 = vpack.c.b16 %v138, %v136
  %v177 = vpack.c.b16 %v139, %v137
  %v178 = vpack.c.b16 %v142, %v140
  %v179 = vpack.c.b16 %v143, %v141
  %v180 = vpack.c.b16 %v146, %v144
  %v181 = vpack.c.b16 %v147, %v145
  %v182 = vpack.c.b16 %v150, %v148
  %v183 = vpack.c.b16 %v151, %v149
  %216 = vmatprep.subr.bf16.mxu0 %v167
  %217 = vmatpush1.bf16.msra.mxu0 %v166
  %218 = vmatprep.subr.bf16.mxu0 %v165
  %219 = vmatpush1.bf16.msra.mxu0 %v164
  %220 = vmatprep.subr.bf16.mxu0 %v163
  %221 = vmatpush1.bf16.msra.mxu0 %v162
  %222 = vmatprep.subr.bf16.mxu0 %v161
  %223 = vmatpush1.bf16.msra.mxu0 %v160
  %224 = vmatprep.subr.bf16.mxu0 %v159
  %225 = vmatpush1.bf16.msra.mxu0 %v158
  %226 = vmatprep.subr.bf16.mxu0 %v157
  %227 = vmatpush1.bf16.msra.mxu0 %v156
  %228 = vmatprep.subr.bf16.mxu0 %v155
  %229 = vmatpush1.bf16.msra.mxu0 %v154
  %230 = vmatprep.subr.bf16.mxu0 %v153
  %231 = vmatpush1.bf16.msra.mxu0 %v152
  %232 = vmatprep.subr.bf16.mxu0 %v183
  %233 = vmatpush2.bf16.msra.mxu0 %v182
  %234 = vmatprep.subr.bf16.mxu0 %v181
  %235 = vmatpush2.bf16.msra.mxu0 %v180
  %236 = vmatprep.subr.bf16.mxu0 %v179
  %237 = vmatpush2.bf16.msra.mxu0 %v178
  %238 = vmatprep.subr.bf16.mxu0 %v177
  %239 = vmatpush2.bf16.msra.mxu0 %v176
  %240 = vmatprep.subr.bf16.mxu0 %v175
  %241 = vmatpush2.bf16.msra.mxu0 %v174
  %242 = vmatprep.subr.bf16.mxu0 %v173
  %243 = vmatpush2.bf16.msra.mxu0 %v172
  %244 = vmatprep.subr.bf16.mxu0 %v171
  %245 = vmatpush2.bf16.msra.mxu0 %v170
  %246 = vmatprep.subr.bf16.mxu0 %v169
  %247 = vmatpush2.bf16.msra.mxu0 %v168
  %248 = vmatprep.mubr.bf16.mxu0 %v53
  %249 = vmatmul.mubr.bf16.gmra.mxu0 %v52
  %v250 = vpop.f32.mrf.mxu0
  %v251 = vadd.f32 0.0, %v250
  %v252 = vpop.f32.mrf.mxu0
  %v253 = vadd.f32 0.0, %v252
  %v254 = vpop.f32.mrf.mxu0
  %v255 = vpop.f32.mrf.mxu0
  %256 = vdwg.mxu0
  %257 = vst [vmem:[%s3] sm:$0xff] %v251
  %258 = vst [vmem:[%s3 + $0x8] sm:$0xff] %v253
  %p259 = scmp.eq.s32.totalorder 0, 0
  // Predicated region
  $region14: #{_elastic_forward.1} parent=0 // pred_check
    %p260 = pneg %p259
  $region15: #{_elastic_forward.1} parent=0 // pred_check_branch
    %262 = sbr.rel (%p260) target = $region17
  $region16: #{_elastic_forward.1} parent=0 // pred_region
    %v263 = vld [vmem:[%s1] sm:$0x3]
    %v264 = vld [vmem:[%s2] sm:$0xff]
    %v265 = vld [vmem:[%s2 + $0x8] sm:$0xff]
    %v266 = vld [vmem:[%s2 + $0x10] sm:$0xff]
    %v267 = vld [vmem:[%s2 + $0x18] sm:$0xff]
    %v268 = vld [vmem:[%s2 + $0x20] sm:$0xff]
    %v269 = vld [vmem:[%s2 + $0x28] sm:$0xff]
    %v270 = vld [vmem:[%s2 + $0x30] sm:$0xff]
    %v271 = vld [vmem:[%s2 + $0x38] sm:$0xff]
    %v272 = vld [vmem:[%s2 + $0x40] sm:$0xff]
    %v273 = vld [vmem:[%s2 + $0x48] sm:$0xff]
    %v274 = vld [vmem:[%s2 + $0x50] sm:$0xff]
    %v275 = vld [vmem:[%s2 + $0x58] sm:$0xff]
    %v276 = vld [vmem:[%s2 + $0x60] sm:$0xff]
    %v277 = vld [vmem:[%s2 + $0x68] sm:$0xff]
    %v278 = vld [vmem:[%s2 + $0x70] sm:$0xff]
    %v279 = vld [vmem:[%s2 + $0x78] sm:$0xff]
    %v280 = vld [vmem:[%s2 + $0x80] sm:$0xff]
    %v281 = vld [vmem:[%s2 + $0x88] sm:$0xff]
    %v282 = vld [vmem:[%s2 + $0x90] sm:$0xff]
    %v283 = vld [vmem:[%s2 + $0x98] sm:$0xff]
    %v284 = vld [vmem:[%s2 + $0xa0] sm:$0xff]
    %v285 = vld [vmem:[%s2 + $0xa8] sm:$0xff]
    %v286 = vld [vmem:[%s2 + $0xb0] sm:$0xff]
    %v287 = vld [vmem:[%s2 + $0xb8] sm:$0xff]
    %v288 = vld [vmem:[%s2 + $0xc0] sm:$0xff]
    %v289 = vld [vmem:[%s2 + $0xc8] sm:$0xff]
    %v290 = vld [vmem:[%s2 + $0xd0] sm:$0xff]
    %v291 = vld [vmem:[%s2 + $0xd8] sm:$0xff]
    %v292 = vld [vmem:[%s2 + $0xe0] sm:$0xff]
    %v293 = vld [vmem:[%s2 + $0xe8] sm:$0xff]
    %v294 = vld [vmem:[%s2 + $0xf0] sm:$0xff]
    %v295 = vld [vmem:[%s2 + $0xf8] sm:$0xff]
    %v298 = vunpack.c.l.s4 1966171168
    %v299 = vunpack.c.0.s8 %v298
    %v300 = vlaneseq
    %v301 = vshrl.u32 %v300, 7
    %v302 = vsub.s32 %v299, %v301
    %v303 = vrot.slane %v263, %v302
    %v304 = vcombine.high %v303, %v303
    %v306 = vunpack.c.l.s4 1966171168
    %v307 = vunpack.c.0.s8 %v306
    %v308 = vlaneseq
    %v309 = vshrl.u32 %v308, 7
    %v310 = vsub.s32 %v307, %v309
    %v311 = vrot.slane %v303, %v310
    %v313 = vunpack.c.l.s4 1966171168
    %v314 = vunpack.c.0.s8 %v313
    %v315 = vlaneseq
    %v316 = vshrl.u32 %v315, 7
    %v317 = vsub.s32 %v314, %v316
    %v318 = vrot.slane %v304, %v317
    %v353 = vunpack.c.l.b16 %v264
    %v354 = vunpack.c.h.b16 %v264
    %v355 = vunpack.c.l.b16 %v265
    %v356 = vunpack.c.h.b16 %v265
    %v357 = vunpack.c.l.b16 %v266
    %v358 = vunpack.c.h.b16 %v266
    %v359 = vunpack.c.l.b16 %v267
    %v360 = vunpack.c.h.b16 %v267
    %v361 = vunpack.c.l.b16 %v268
    %v362 = vunpack.c.h.b16 %v268
    %v363 = vunpack.c.l.b16 %v269
    %v364 = vunpack.c.h.b16 %v269
    %v365 = vunpack.c.l.b16 %v270
    %v366 = vunpack.c.h.b16 %v270
    %v367 = vunpack.c.l.b16 %v271
    %v368 = vunpack.c.h.b16 %v271
    %v369 = vunpack.c.l.b16 %v272
    %v370 = vunpack.c.h.b16 %v272
    %v371 = vunpack.c.l.b16 %v273
    %v372 = vunpack.c.h.b16 %v273
    %v373 = vunpack.c.l.b16 %v274
    %v374 = vunpack.c.h.b16 %v274
    %v375 = vunpack.c.l.b16 %v275
    %v376 = vunpack.c.h.b16 %v275
    %v377 = vunpack.c.l.b16 %v276
    %v378 = vunpack.c.h.b16 %v276
    %v379 = vunpack.c.l.b16 %v277
    %v380 = vunpack.c.h.b16 %v277
    %v381 = vunpack.c.l.b16 %v278
    %v382 = vunpack.c.h.b16 %v278
    %v383 = vunpack.c.l.b16 %v279
    %v384 = vunpack.c.h.b16 %v279
    %v385 = vunpack.c.l.b16 %v280
    %v386 = vunpack.c.h.b16 %v280
    %v387 = vunpack.c.l.b16 %v281
    %v388 = vunpack.c.h.b16 %v281
    %v389 = vunpack.c.l.b16 %v282
    %v390 = vunpack.c.h.b16 %v282
    %v391 = vunpack.c.l.b16 %v283
    %v392 = vunpack.c.h.b16 %v283
    %v393 = vunpack.c.l.b16 %v284
    %v394 = vunpack.c.h.b16 %v284
    %v395 = vunpack.c.l.b16 %v285
    %v396 = vunpack.c.h.b16 %v285
    %v397 = vunpack.c.l.b16 %v286
    %v398 = vunpack.c.h.b16 %v286
    %v399 = vunpack.c.l.b16 %v287
    %v400 = vunpack.c.h.b16 %v287
    %v401 = vunpack.c.l.b16 %v288
    %v402 = vunpack.c.h.b16 %v288
    %v403 = vunpack.c.l.b16 %v289
    %v404 = vunpack.c.h.b16 %v289
    %v405 = vunpack.c.l.b16 %v290
    %v406 = vunpack.c.h.b16 %v290
    %v407 = vunpack.c.l.b16 %v291
    %v408 = vunpack.c.h.b16 %v291
    %v409 = vunpack.c.l.b16 %v292
    %v410 = vunpack.c.h.b16 %v292
    %v411 = vunpack.c.l.b16 %v293
    %v412 = vunpack.c.h.b16 %v293
    %v413 = vunpack.c.l.b16 %v294
    %v414 = vunpack.c.h.b16 %v294
    %v415 = vunpack.c.l.b16 %v295
    %v416 = vunpack.c.h.b16 %v295
    %v417 = vpack.c.b16 %v355, %v353
    %v418 = vpack.c.b16 %v356, %v354
    %v419 = vpack.c.b16 %v359, %v357
    %v420 = vpack.c.b16 %v360, %v358
    %v421 = vpack.c.b16 %v363, %v361
    %v422 = vpack.c.b16 %v364, %v362
    %v423 = vpack.c.b16 %v367, %v365
    %v424 = vpack.c.b16 %v368, %v366
    %v425 = vpack.c.b16 %v371, %v369
    %v426 = vpack.c.b16 %v372, %v370
    %v427 = vpack.c.b16 %v375, %v373
    %v428 = vpack.c.b16 %v376, %v374
    %v429 = vpack.c.b16 %v379, %v377
    %v430 = vpack.c.b16 %v380, %v378
    %v431 = vpack.c.b16 %v383, %v381
    %v432 = vpack.c.b16 %v384, %v382
    %v433 = vpack.c.b16 %v387, %v385
    %v434 = vpack.c.b16 %v388, %v386
    %v435 = vpack.c.b16 %v391, %v389
    %v436 = vpack.c.b16 %v392, %v390
    %v437 = vpack.c.b16 %v395, %v393
    %v438 = vpack.c.b16 %v396, %v394
    %v439 = vpack.c.b16 %v399, %v397
    %v440 = vpack.c.b16 %v400, %v398
    %v441 = vpack.c.b16 %v403, %v401
    %v442 = vpack.c.b16 %v404, %v402
    %v443 = vpack.c.b16 %v407, %v405
    %v444 = vpack.c.b16 %v408, %v406
    %v445 = vpack.c.b16 %v411, %v409
    %v446 = vpack.c.b16 %v412, %v410
    %v447 = vpack.c.b16 %v415, %v413
    %v448 = vpack.c.b16 %v416, %v414
    %481 = vmatprep.subr.bf16.mxu0 %v432
    %482 = vmatpush1.bf16.msra.mxu0 %v431
    %483 = vmatprep.subr.bf16.mxu0 %v430
    %484 = vmatpush1.bf16.msra.mxu0 %v429
    %485 = vmatprep.subr.bf16.mxu0 %v428
    %486 = vmatpush1.bf16.msra.mxu0 %v427
    %487 = vmatprep.subr.bf16.mxu0 %v426
    %488 = vmatpush1.bf16.msra.mxu0 %v425
    %489 = vmatprep.subr.bf16.mxu0 %v424
    %490 = vmatpush1.bf16.msra.mxu0 %v423
    %491 = vmatprep.subr.bf16.mxu0 %v422
    %492 = vmatpush1.bf16.msra.mxu0 %v421
    %493 = vmatprep.subr.bf16.mxu0 %v420
    %494 = vmatpush1.bf16.msra.mxu0 %v419
    %495 = vmatprep.subr.bf16.mxu0 %v418
    %496 = vmatpush1.bf16.msra.mxu0 %v417
    %497 = vmatprep.subr.bf16.mxu0 %v448
    %498 = vmatpush2.bf16.msra.mxu0 %v447
    %499 = vmatprep.subr.bf16.mxu0 %v446
    %500 = vmatpush2.bf16.msra.mxu0 %v445
    %501 = vmatprep.subr.bf16.mxu0 %v444
    %502 = vmatpush2.bf16.msra.mxu0 %v443
    %503 = vmatprep.subr.bf16.mxu0 %v442
    %504 = vmatpush2.bf16.msra.mxu0 %v441
    %505 = vmatprep.subr.bf16.mxu0 %v440
    %506 = vmatpush2.bf16.msra.mxu0 %v439
    %507 = vmatprep.subr.bf16.mxu0 %v438
    %508 = vmatpush2.bf16.msra.mxu0 %v437
    %509 = vmatprep.subr.bf16.mxu0 %v436
    %510 = vmatpush2.bf16.msra.mxu0 %v435
    %511 = vmatprep.subr.bf16.mxu0 %v434
    %512 = vmatpush2.bf16.msra.mxu0 %v433
    %513 = vmatprep.mubr.bf16.mxu0 %v318
    %514 = vmatmul.mubr.bf16.gmra.mxu0 %v311
    %v515 = vpop.f32.mrf.mxu0
    %v516 = vadd.f32 0.0, %v515
    %v517 = vpop.f32.mrf.mxu0
    %v518 = vadd.f32 0.0, %v517
    %v519 = vpop.f32.mrf.mxu0
    %v520 = vpop.f32.mrf.mxu0
    %521 = vdwg.mxu0
    %v524 = vcombine.low %v516, %v518
    %v526 = vunpack.c.l.s4 1983009808
    %v527 = vunpack.c.0.s8 %v526
    %v528 = vlaneseq
    %v529 = vshrl.u32 %v528, 7
    %v530 = vsub.s32 %v527, %v529
    %v531 = vrot.slane %v524, %v530
    %533 = vst [vmem:[%s4] sm:$0xf] %v531
  $region17: #{_elastic_forward.1} parent=0 // pred_fallthru
    _
  // Predicated region
  $region18: #{_elastic_forward.1} parent=0 // pred_check
    _
  $region19: #{_elastic_forward.1} parent=0 // pred_check_branch
    %535 = sbr.rel (0) target = $region21
  $region20: #{_elastic_forward.1} parent=0 // pred_region
    _
  $region21: #{_elastic_forward.1} parent=0 // pred_fallthru
    _
  // Predicated region
  $region22: #{_elastic_forward.1} parent=0 // pred_check
    _
  $region23: #{_elastic_forward.1} parent=0 // pred_check_branch
    %537 = sbr.rel (0) target = $region25
  $region24: #{_elastic_forward.1} parent=0 // pred_region
    _
  $region25: #{_elastic_forward.1} parent=0 // pred_fallthru
    _
  // Predicated region
  $region26: #{_elastic_forward.1} parent=0 // pred_check
    _
  $region27: #{_elastic_forward.1} parent=0 // pred_check_branch
    %539 = sbr.rel (0) target = $region29
  $region28: #{_elastic_forward.1} parent=0 // pred_region
    _
  $region29: #{_elastic_forward.1} parent=0 // pred_fallthru
    _
  // Predicated region
  $region30: #{_elastic_forward.1} parent=0 // pred_check
    _
  $region31: #{_elastic_forward.1} parent=0 // pred_check_branch
    %541 = sbr.rel (0) target = $region33
  $region32: #{_elastic_forward.1} parent=0 // pred_region
    _
  $region33: #{_elastic_forward.1} parent=0 // pred_fallthru
    _

</llo_original>
